<compile_context>
chip_gen: v7x
topology: tpu7x:2x2x1
jax: 0.10.0
libtpu: 0.0.40
codegen_flags: <defaults>
</compile_context>

<pallas_src>
import jax
import jax.numpy as jnp
from jax import lax
from jax.experimental import pallas as pl
from jax.experimental.pallas import tpu as pltpu


def _round_up(n, m):
    return ((n + m - 1) // m) * m


def rnn_classifier_kernel(x_ref, wih_ref, whh_ref, wlin_ref, blin_ref,
                          out_ref, hid_ref, pre_ref):
    # x_ref:    (T, TB, Ip)  bf16  time-major input tile (batch tile TB)
    # wih_ref:  (Ip, Hp)     bf16  W_ih^T (pre-transposed, zero-padded)
    # whh_ref:  (Hp, Hp)     bf16  W_hh^T
    # wlin_ref: (Hp, Op)     bf16  W_lin^T
    # blin_ref: (1, Op)      f32   linear bias (zero-padded)
    # out_ref:  (TB, Op)     f32   logits
    # hid_ref:  (TB, Hp)     f32   final hidden state
    # pre_ref:  (T, TB, Hp)  f32   hoisted input projection (VMEM scratch, 3-D: no flatten)
    T, TB, _ = x_ref.shape
    Hp = whh_ref.shape[0]

    wih = wih_ref[...]
    whh = whh_ref[...]

    # Hoisted input projection: independent of the recurrence, written per timestep
    # into the 3-D scratch (no in-kernel reshape of x; leading-axis indexing only).
    def proj(t, carry):
        pre_ref[t] = jnp.dot(x_ref[t], wih, preferred_element_type=jnp.float32)
        return carry

    lax.fori_loop(0, T, proj, 0, unroll=True)

    # Serial recurrence: h_{t+1} = tanh(pre[t] + h_t @ W_hh^T).
    # bf16 MXU operands, f32 accumulation, f32 elementwise / state.
    def step(t, h):
        acc = jnp.dot(h.astype(jnp.bfloat16), whh,
                      preferred_element_type=jnp.float32)
        return jnp.tanh(pre_ref[t] + acc)

    h0 = jnp.zeros((TB, Hp), jnp.float32)
    h_final = lax.fori_loop(0, T, step, h0, unroll=True)   # short static trip count

    # Dropout with p=0 (and PyTorch eval-mode dropout) is the identity.
    # TODO(synk): training-mode dropout with p>0 not implemented (module uses p=0).
    logits = jnp.dot(h_final.astype(jnp.bfloat16), wlin_ref[...],
                     preferred_element_type=jnp.float32) + blin_ref[...]

    out_ref[...] = logits
    hid_ref[...] = h_final


def rnn_classifier_forward(x, w_ih, w_hh, w_lin, b_lin, *, batch_tile=256):
    B, T, I = x.shape
    H = w_hh.shape[0]
    O = w_lin.shape[0]

    # TPU-friendly padding: lanes (last dims of weights/outputs) -> 128,
    # sublanes -> 8. Input feature dim stays narrow (no dead-lane HBM traffic).
    Ip = _round_up(max(I, 8), 8)
    Hp = _round_up(H, 128)
    Op = _round_up(O, 128)

    # Batch tile: fill the MXU rows. Small batches -> single full tile;
    # large batches -> 256-row tiles, grid shards them (v7x: both TensorCores).
    Bp_min = _round_up(max(B, 8), 8)
    if Bp_min <= batch_tile:
        TB, Bp = Bp_min, Bp_min
    else:
        TB = batch_tile
        Bp = _round_up(B, TB)
    grid = (Bp // TB,)

    # Time-major, zero-padded, bf16 input: (T, Bp, Ip).
    x_tm = jnp.transpose(x, (1, 0, 2))
    x_p = jnp.zeros((T, Bp, Ip), jnp.bfloat16).at[:, :B, :I].set(
        x_tm.astype(jnp.bfloat16))

    # Pre-transposed, zero-padded bf16 weights (done once in the XLA wrapper).
    wih_t = jnp.zeros((Ip, Hp), jnp.bfloat16).at[:I, :H].set(w_ih.T.astype(jnp.bfloat16))
    whh_t = jnp.zeros((Hp, Hp), jnp.bfloat16).at[:H, :H].set(w_hh.T.astype(jnp.bfloat16))
    wlin_t = jnp.zeros((Hp, Op), jnp.bfloat16).at[:H, :O].set(w_lin.T.astype(jnp.bfloat16))
    blin_p = jnp.zeros((1, Op), jnp.float32).at[0, :O].set(
        b_lin.reshape(-1).astype(jnp.float32))

    # VMEM budget estimate (double-buffered input/outputs, resident weights, scratch)
    # so larger tiles don't silently hit v5e's 16 MiB scoped-VMEM default.
    est_vmem = (2 * (T * TB * Ip) * 2                              # x block (bf16)
                + 2 * 2 * (Ip * Hp + Hp * Hp + Hp * Op)            # weights (bf16)
                + 2 * Op * 4                                       # bias (f32)
                + 2 * (TB * Op + TB * Hp) * 4                      # out / hid blocks
                + T * TB * Hp * 4)                                 # pre_ref scratch
    vmem_limit = int(min(64 * 1024 * 1024, max(32 * 1024 * 1024, 2 * est_vmem)))

    flops = 2 * Bp * T * (Ip * Hp + Hp * Hp) + 2 * Bp * Hp * Op
    bytes_accessed = (x_p.size * 2
                      + (wih_t.size + whh_t.size + wlin_t.size) * 2
                      + blin_p.size * 4
                      + (Bp * Op + Bp * Hp) * 4)

    out_p, hid_p = pl.pallas_call(
        rnn_classifier_kernel,
        out_shape=(jax.ShapeDtypeStruct((Bp, Op), jnp.float32),
                   jax.ShapeDtypeStruct((Bp, Hp), jnp.float32)),
        grid=grid,
        in_specs=[
            pl.BlockSpec((T, TB, Ip), lambda b: (0, b, 0)),   # batch-tiled x
            pl.BlockSpec((Ip, Hp), lambda b: (0, 0)),         # weights stay resident
            pl.BlockSpec((Hp, Hp), lambda b: (0, 0)),
            pl.BlockSpec((Hp, Op), lambda b: (0, 0)),
            pl.BlockSpec((1, Op), lambda b: (0, 0)),
        ],
        out_specs=(
            pl.BlockSpec((TB, Op), lambda b: (b, 0)),          # lane-dense (128) stores
            pl.BlockSpec((TB, Hp), lambda b: (b, 0)),
        ),
        scratch_shapes=[pltpu.VMEM((T, TB, Hp), jnp.float32)],
        cost_estimate=pl.CostEstimate(flops=flops,
                                      transcendentals=T * Bp * Hp,
                                      bytes_accessed=bytes_accessed),
        compiler_params=pltpu.CompilerParams(
            dimension_semantics=("parallel",),
            vmem_limit_bytes=vmem_limit),
    )(x_p, wih_t, whh_t, wlin_t, blin_p)

    out = out_p[:B, :O]
    hidden = hid_p[:B, :H][None]            # (1, B, H) like PyTorch's hidden
    return out, hidden


def reference_forward(x, w_ih, w_hh, w_lin, b_lin):
    """Pure-JAX f32 reference matching the PyTorch module forward."""
    B, T, I = x.shape
    H = w_hh.shape[0]
    h = jnp.zeros((B, H), jnp.float32)
    for t in range(T):
        h = jnp.tanh(x[:, t, :] @ w_ih.T + h @ w_hh.T)
    y = h @ w_lin.T + b_lin.reshape(-1)
    return y, h[None]


if __name__ == "__main__":
    # Small shapes consistent with the module.
    B, T, I, H, O = 2, 8, 4, 32, 8

    key = jax.random.PRNGKey(0)
    k0, k1, k2, k3, k4 = jax.random.split(key, 5)

    def bf16_representable(a):
        # Make test operands exactly representable in bf16 so the f32 reference and
        # the bf16-operand MXU kernel see identical inputs; the remaining mismatch
        # is only the per-step bf16 cast of h + accumulation-order differences.
        return a.astype(jnp.bfloat16).astype(jnp.float32)

    x = bf16_representable(jax.random.normal(k0, (B, T, I), dtype=jnp.float32))

    # Deterministic parameter init (PyTorch-style uniform(-1/sqrt(H), 1/sqrt(H))).
    bound = 1.0 / jnp.sqrt(jnp.float32(H))
    w_ih = bf16_representable(jax.random.uniform(k1, (H, I), jnp.float32, -bound, bound))
    w_hh = bf16_representable(jax.random.uniform(k2, (H, H), jnp.float32, -bound, bound))
    w_lin = bf16_representable(jax.random.uniform(k3, (O, H), jnp.float32, -bound, bound))
    b_lin = bf16_representable(jax.random.uniform(k4, (1, O), jnp.float32, -bound, bound))

    out, hidden = rnn_classifier_forward(x, w_ih, w_hh, w_lin, b_lin)
    out = jax.block_until_ready(out)
    hidden = jax.block_until_ready(hidden)

    # Correctness check against a pure-JAX f32 reference. Tolerance reflects the
    # bf16 MXU operands (h is re-rounded to bf16 each recurrence step); the
    # previous all-f32 kernel used 1e-5.
    ref_out, ref_hidden = reference_forward(x, w_ih, w_hh, w_lin, b_lin)
    assert out.shape == (B, O) and hidden.shape == (1, B, H)
    assert jnp.allclose(out, ref_out, atol=5e-2, rtol=5e-2)
    assert jnp.allclose(hidden, ref_hidden, atol=5e-2, rtol=5e-2)

    print("KERNEL_OK")
</pallas_src>

<mosaic_0001>
module attributes {stable_mosaic.version = 11 : i64} {
  func.func @rnn_classifier_kernel(%arg0: i32, %arg1: memref<8x8x8xbf16, #tpu.memory_space<vmem>>, %arg2: memref<8x128xbf16, #tpu.memory_space<vmem>>, %arg3: memref<128x128xbf16, #tpu.memory_space<vmem>>, %arg4: memref<128x128xbf16, #tpu.memory_space<vmem>>, %arg5: memref<1x128xf32, #tpu.memory_space<vmem>>, %arg6: memref<8x128xf32, #tpu.memory_space<vmem>>, %arg7: memref<8x128xf32, #tpu.memory_space<vmem>>, %arg8: memref<8x8x128xf32, #tpu.memory_space<vmem>>) attributes {dimension_semantics = [#tpu.dimension_semantics<parallel>], iteration_bounds = array<i64: 1>, scalar_prefetch = 0 : i64, scratch_operands = 1 : i64, tpu.core_type = #tpu.core_type<tc>, window_params = [{transform_indices = @transform_0, window_bounds = array<i64: 8, 8, 8>}, {pipeline_mode = #tpu.pipeline_mode<synchronous>, transform_indices = @transform_1, window_bounds = array<i64: 8, 128>}, {pipeline_mode = #tpu.pipeline_mode<synchronous>, transform_indices = @transform_2, window_bounds = array<i64: 128, 128>}, {pipeline_mode = #tpu.pipeline_mode<synchronous>, transform_indices = @transform_3, window_bounds = array<i64: 128, 128>}, {pipeline_mode = #tpu.pipeline_mode<synchronous>, transform_indices = @transform_4, window_bounds = array<i64: 1, 128>}, {transform_indices = @transform_5, window_bounds = array<i64: 8, 128>}, {transform_indices = @transform_6, window_bounds = array<i64: 8, 128>}]} {
    %c0 = arith.constant 0 : index
    %c0_0 = arith.constant 0 : index
    %0 = vector.load %arg2[%c0, %c0_0] : memref<8x128xbf16, #tpu.memory_space<vmem>>, vector<8x128xbf16>
    %c0_1 = arith.constant 0 : index
    %c0_2 = arith.constant 0 : index
    %1 = vector.load %arg3[%c0_1, %c0_2] : memref<128x128xbf16, #tpu.memory_space<vmem>>, vector<128x128xbf16>
    %c0_i32 = arith.constant 0 : i32
    %2 = arith.index_cast %c0_i32 : i32 to index
    %c0_3 = arith.constant 0 : index
    %c0_4 = arith.constant 0 : index
    %3 = vector.load %arg1[%2, %c0_3, %c0_4] : memref<8x8x8xbf16, #tpu.memory_space<vmem>>, vector<1x8x8xbf16>
    %4 = vector.shape_cast %3 : vector<1x8x8xbf16> to vector<8x8xbf16>
    %cst = arith.constant dense<0.000000e+00> : vector<8x128xf32>
    %5 = tpu.matmul %4, %0, %cst {dimension_numbers = #tpu.dot_dimension_numbers<[1], [0], [0], [1], [0, 0, 1, 1], [], []>} : vector<8x8xbf16>, vector<8x128xbf16>, vector<8x128xf32> -> vector<8x128xf32>
    %6 = arith.index_cast %c0_i32 : i32 to index
    %c0_5 = arith.constant 0 : index
    %c0_6 = arith.constant 0 : index
    %7 = vector.load %arg8[%6, %c0_5, %c0_6] : memref<8x8x128xf32, #tpu.memory_space<vmem>>, vector<1x8x128xf32>
    %8 = vector.shape_cast %7 : vector<1x8x128xf32> to vector<8x128xf32>
    %9 = vector.shape_cast %5 : vector<8x128xf32> to vector<1x8x128xf32>
    tpu.vector_store %arg8[%6, %c0_5, %c0_6], %9 {strides = array<i32>} : memref<8x8x128xf32, #tpu.memory_space<vmem>>, vector<1x8x128xf32>,
    %c1_i32 = arith.constant 1 : i32
    %10 = arith.index_cast %c1_i32 : i32 to index
    %c0_7 = arith.constant 0 : index
    %c0_8 = arith.constant 0 : index
    %11 = vector.load %arg1[%10, %c0_7, %c0_8] : memref<8x8x8xbf16, #tpu.memory_space<vmem>>, vector<1x8x8xbf16>
    %12 = vector.shape_cast %11 : vector<1x8x8xbf16> to vector<8x8xbf16>
    %cst_9 = arith.constant dense<0.000000e+00> : vector<8x128xf32>
    %13 = tpu.matmul %12, %0, %cst_9 {dimension_numbers = #tpu.dot_dimension_numbers<[1], [0], [0], [1], [0, 0, 1, 1], [], []>} : vector<8x8xbf16>, vector<8x128xbf16>, vector<8x128xf32> -> vector<8x128xf32>
    %14 = arith.index_cast %c1_i32 : i32 to index
    %c0_10 = arith.constant 0 : index
    %c0_11 = arith.constant 0 : index
    %15 = vector.load %arg8[%14, %c0_10, %c0_11] : memref<8x8x128xf32, #tpu.memory_space<vmem>>, vector<1x8x128xf32>
    %16 = vector.shape_cast %15 : vector<1x8x128xf32> to vector<8x128xf32>
    %17 = vector.shape_cast %13 : vector<8x128xf32> to vector<1x8x128xf32>
    tpu.vector_store %arg8[%14, %c0_10, %c0_11], %17 {strides = array<i32>} : memref<8x8x128xf32, #tpu.memory_space<vmem>>, vector<1x8x128xf32>,
    %c2_i32 = arith.constant 2 : i32
    %18 = arith.index_cast %c2_i32 : i32 to index
    %c0_12 = arith.constant 0 : index
    %c0_13 = arith.constant 0 : index
    %19 = vector.load %arg1[%18, %c0_12, %c0_13] : memref<8x8x8xbf16, #tpu.memory_space<vmem>>, vector<1x8x8xbf16>
    %20 = vector.shape_cast %19 : vector<1x8x8xbf16> to vector<8x8xbf16>
    %cst_14 = arith.constant dense<0.000000e+00> : vector<8x128xf32>
    %21 = tpu.matmul %20, %0, %cst_14 {dimension_numbers = #tpu.dot_dimension_numbers<[1], [0], [0], [1], [0, 0, 1, 1], [], []>} : vector<8x8xbf16>, vector<8x128xbf16>, vector<8x128xf32> -> vector<8x128xf32>
    %22 = arith.index_cast %c2_i32 : i32 to index
    %c0_15 = arith.constant 0 : index
    %c0_16 = arith.constant 0 : index
    %23 = vector.load %arg8[%22, %c0_15, %c0_16] : memref<8x8x128xf32, #tpu.memory_space<vmem>>, vector<1x8x128xf32>
    %24 = vector.shape_cast %23 : vector<1x8x128xf32> to vector<8x128xf32>
    %25 = vector.shape_cast %21 : vector<8x128xf32> to vector<1x8x128xf32>
    tpu.vector_store %arg8[%22, %c0_15, %c0_16], %25 {strides = array<i32>} : memref<8x8x128xf32, #tpu.memory_space<vmem>>, vector<1x8x128xf32>,
    %c3_i32 = arith.constant 3 : i32
    %26 = arith.index_cast %c3_i32 : i32 to index
    %c0_17 = arith.constant 0 : index
    %c0_18 = arith.constant 0 : index
    %27 = vector.load %arg1[%26, %c0_17, %c0_18] : memref<8x8x8xbf16, #tpu.memory_space<vmem>>, vector<1x8x8xbf16>
    %28 = vector.shape_cast %27 : vector<1x8x8xbf16> to vector<8x8xbf16>
    %cst_19 = arith.constant dense<0.000000e+00> : vector<8x128xf32>
    %29 = tpu.matmul %28, %0, %cst_19 {dimension_numbers = #tpu.dot_dimension_numbers<[1], [0], [0], [1], [0, 0, 1, 1], [], []>} : vector<8x8xbf16>, vector<8x128xbf16>, vector<8x128xf32> -> vector<8x128xf32>
    %30 = arith.index_cast %c3_i32 : i32 to index
    %c0_20 = arith.constant 0 : index
    %c0_21 = arith.constant 0 : index
    %31 = vector.load %arg8[%30, %c0_20, %c0_21] : memref<8x8x128xf32, #tpu.memory_space<vmem>>, vector<1x8x128xf32>
    %32 = vector.shape_cast %31 : vector<1x8x128xf32> to vector<8x128xf32>
    %33 = vector.shape_cast %29 : vector<8x128xf32> to vector<1x8x128xf32>
    tpu.vector_store %arg8[%30, %c0_20, %c0_21], %33 {strides = array<i32>} : memref<8x8x128xf32, #tpu.memory_space<vmem>>, vector<1x8x128xf32>,
    %c4_i32 = arith.constant 4 : i32
    %34 = arith.index_cast %c4_i32 : i32 to index
    %c0_22 = arith.constant 0 : index
    %c0_23 = arith.constant 0 : index
    %35 = vector.load %arg1[%34, %c0_22, %c0_23] : memref<8x8x8xbf16, #tpu.memory_space<vmem>>, vector<1x8x8xbf16>
    %36 = vector.shape_cast %35 : vector<1x8x8xbf16> to vector<8x8xbf16>
    %cst_24 = arith.constant dense<0.000000e+00> : vector<8x128xf32>
    %37 = tpu.matmul %36, %0, %cst_24 {dimension_numbers = #tpu.dot_dimension_numbers<[1], [0], [0], [1], [0, 0, 1, 1], [], []>} : vector<8x8xbf16>, vector<8x128xbf16>, vector<8x128xf32> -> vector<8x128xf32>
    %38 = arith.index_cast %c4_i32 : i32 to index
    %c0_25 = arith.constant 0 : index
    %c0_26 = arith.constant 0 : index
    %39 = vector.load %arg8[%38, %c0_25, %c0_26] : memref<8x8x128xf32, #tpu.memory_space<vmem>>, vector<1x8x128xf32>
    %40 = vector.shape_cast %39 : vector<1x8x128xf32> to vector<8x128xf32>
    %41 = vector.shape_cast %37 : vector<8x128xf32> to vector<1x8x128xf32>
    tpu.vector_store %arg8[%38, %c0_25, %c0_26], %41 {strides = array<i32>} : memref<8x8x128xf32, #tpu.memory_space<vmem>>, vector<1x8x128xf32>,
    %c5_i32 = arith.constant 5 : i32
    %42 = arith.index_cast %c5_i32 : i32 to index
    %c0_27 = arith.constant 0 : index
    %c0_28 = arith.constant 0 : index
    %43 = vector.load %arg1[%42, %c0_27, %c0_28] : memref<8x8x8xbf16, #tpu.memory_space<vmem>>, vector<1x8x8xbf16>
    %44 = vector.shape_cast %43 : vector<1x8x8xbf16> to vector<8x8xbf16>
    %cst_29 = arith.constant dense<0.000000e+00> : vector<8x128xf32>
    %45 = tpu.matmul %44, %0, %cst_29 {dimension_numbers = #tpu.dot_dimension_numbers<[1], [0], [0], [1], [0, 0, 1, 1], [], []>} : vector<8x8xbf16>, vector<8x128xbf16>, vector<8x128xf32> -> vector<8x128xf32>
    %46 = arith.index_cast %c5_i32 : i32 to index
    %c0_30 = arith.constant 0 : index
    %c0_31 = arith.constant 0 : index
    %47 = vector.load %arg8[%46, %c0_30, %c0_31] : memref<8x8x128xf32, #tpu.memory_space<vmem>>, vector<1x8x128xf32>
    %48 = vector.shape_cast %47 : vector<1x8x128xf32> to vector<8x128xf32>
    %49 = vector.shape_cast %45 : vector<8x128xf32> to vector<1x8x128xf32>
    tpu.vector_store %arg8[%46, %c0_30, %c0_31], %49 {strides = array<i32>} : memref<8x8x128xf32, #tpu.memory_space<vmem>>, vector<1x8x128xf32>,
    %c6_i32 = arith.constant 6 : i32
    %50 = arith.index_cast %c6_i32 : i32 to index
    %c0_32 = arith.constant 0 : index
    %c0_33 = arith.constant 0 : index
    %51 = vector.load %arg1[%50, %c0_32, %c0_33] : memref<8x8x8xbf16, #tpu.memory_space<vmem>>, vector<1x8x8xbf16>
    %52 = vector.shape_cast %51 : vector<1x8x8xbf16> to vector<8x8xbf16>
    %cst_34 = arith.constant dense<0.000000e+00> : vector<8x128xf32>
    %53 = tpu.matmul %52, %0, %cst_34 {dimension_numbers = #tpu.dot_dimension_numbers<[1], [0], [0], [1], [0, 0, 1, 1], [], []>} : vector<8x8xbf16>, vector<8x128xbf16>, vector<8x128xf32> -> vector<8x128xf32>
    %54 = arith.index_cast %c6_i32 : i32 to index
    %c0_35 = arith.constant 0 : index
    %c0_36 = arith.constant 0 : index
    %55 = vector.load %arg8[%54, %c0_35, %c0_36] : memref<8x8x128xf32, #tpu.memory_space<vmem>>, vector<1x8x128xf32>
    %56 = vector.shape_cast %55 : vector<1x8x128xf32> to vector<8x128xf32>
    %57 = vector.shape_cast %53 : vector<8x128xf32> to vector<1x8x128xf32>
    tpu.vector_store %arg8[%54, %c0_35, %c0_36], %57 {strides = array<i32>} : memref<8x8x128xf32, #tpu.memory_space<vmem>>, vector<1x8x128xf32>,
    %c7_i32 = arith.constant 7 : i32
    %58 = arith.index_cast %c7_i32 : i32 to index
    %c0_37 = arith.constant 0 : index
    %c0_38 = arith.constant 0 : index
    %59 = vector.load %arg1[%58, %c0_37, %c0_38] : memref<8x8x8xbf16, #tpu.memory_space<vmem>>, vector<1x8x8xbf16>
    %60 = vector.shape_cast %59 : vector<1x8x8xbf16> to vector<8x8xbf16>
    %cst_39 = arith.constant dense<0.000000e+00> : vector<8x128xf32>
    %61 = tpu.matmul %60, %0, %cst_39 {dimension_numbers = #tpu.dot_dimension_numbers<[1], [0], [0], [1], [0, 0, 1, 1], [], []>} : vector<8x8xbf16>, vector<8x128xbf16>, vector<8x128xf32> -> vector<8x128xf32>
    %62 = arith.index_cast %c7_i32 : i32 to index
    %c0_40 = arith.constant 0 : index
    %c0_41 = arith.constant 0 : index
    %63 = vector.load %arg8[%62, %c0_40, %c0_41] : memref<8x8x128xf32, #tpu.memory_space<vmem>>, vector<1x8x128xf32>
    %64 = vector.shape_cast %63 : vector<1x8x128xf32> to vector<8x128xf32>
    %65 = vector.shape_cast %61 : vector<8x128xf32> to vector<1x8x128xf32>
    tpu.vector_store %arg8[%62, %c0_40, %c0_41], %65 {strides = array<i32>} : memref<8x8x128xf32, #tpu.memory_space<vmem>>, vector<1x8x128xf32>,
    %c8_i32 = arith.constant 8 : i32
    %cst_42 = arith.constant 0.000000e+00 : f32
    %66 = vector.broadcast %cst_42 : f32 to vector<8x128xf32>
    %c0_i32_43 = arith.constant 0 : i32
    %67 = arith.truncf %66 : vector<8x128xf32> to vector<8x128xbf16>
    %cst_44 = arith.constant dense<0.000000e+00> : vector<8x128xf32>
    %68 = tpu.matmul %67, %1, %cst_44 {dimension_numbers = #tpu.dot_dimension_numbers<[1], [0], [0], [1], [0, 0, 1, 1], [], []>} : vector<8x128xbf16>, vector<128x128xbf16>, vector<8x128xf32> -> vector<8x128xf32>
    %69 = arith.index_cast %c0_i32_43 : i32 to index
    %c0_45 = arith.constant 0 : index
    %c0_46 = arith.constant 0 : index
    %70 = vector.load %arg8[%69, %c0_45, %c0_46] : memref<8x8x128xf32, #tpu.memory_space<vmem>>, vector<1x8x128xf32>
    %71 = vector.shape_cast %70 : vector<1x8x128xf32> to vector<8x128xf32>
    %72 = arith.addf %71, %68 : vector<8x128xf32>
    %73 = math.tanh %72 : vector<8x128xf32>
    %c1_i32_47 = arith.constant 1 : i32
    %74 = arith.truncf %73 : vector<8x128xf32> to vector<8x128xbf16>
    %cst_48 = arith.constant dense<0.000000e+00> : vector<8x128xf32>
    %75 = tpu.matmul %74, %1, %cst_48 {dimension_numbers = #tpu.dot_dimension_numbers<[1], [0], [0], [1], [0, 0, 1, 1], [], []>} : vector<8x128xbf16>, vector<128x128xbf16>, vector<8x128xf32> -> vector<8x128xf32>
    %76 = arith.index_cast %c1_i32_47 : i32 to index
    %c0_49 = arith.constant 0 : index
    %c0_50 = arith.constant 0 : index
    %77 = vector.load %arg8[%76, %c0_49, %c0_50] : memref<8x8x128xf32, #tpu.memory_space<vmem>>, vector<1x8x128xf32>
    %78 = vector.shape_cast %77 : vector<1x8x128xf32> to vector<8x128xf32>
    %79 = arith.addf %78, %75 : vector<8x128xf32>
    %80 = math.tanh %79 : vector<8x128xf32>
    %c2_i32_51 = arith.constant 2 : i32
    %81 = arith.truncf %80 : vector<8x128xf32> to vector<8x128xbf16>
    %cst_52 = arith.constant dense<0.000000e+00> : vector<8x128xf32>
    %82 = tpu.matmul %81, %1, %cst_52 {dimension_numbers = #tpu.dot_dimension_numbers<[1], [0], [0], [1], [0, 0, 1, 1], [], []>} : vector<8x128xbf16>, vector<128x128xbf16>, vector<8x128xf32> -> vector<8x128xf32>
    %83 = arith.index_cast %c2_i32_51 : i32 to index
    %c0_53 = arith.constant 0 : index
    %c0_54 = arith.constant 0 : index
    %84 = vector.load %arg8[%83, %c0_53, %c0_54] : memref<8x8x128xf32, #tpu.memory_space<vmem>>, vector<1x8x128xf32>
    %85 = vector.shape_cast %84 : vector<1x8x128xf32> to vector<8x128xf32>
    %86 = arith.addf %85, %82 : vector<8x128xf32>
    %87 = math.tanh %86 : vector<8x128xf32>
    %c3_i32_55 = arith.constant 3 : i32
    %88 = arith.truncf %87 : vector<8x128xf32> to vector<8x128xbf16>
    %cst_56 = arith.constant dense<0.000000e+00> : vector<8x128xf32>
    %89 = tpu.matmul %88, %1, %cst_56 {dimension_numbers = #tpu.dot_dimension_numbers<[1], [0], [0], [1], [0, 0, 1, 1], [], []>} : vector<8x128xbf16>, vector<128x128xbf16>, vector<8x128xf32> -> vector<8x128xf32>
    %90 = arith.index_cast %c3_i32_55 : i32 to index
    %c0_57 = arith.constant 0 : index
    %c0_58 = arith.constant 0 : index
    %91 = vector.load %arg8[%90, %c0_57, %c0_58] : memref<8x8x128xf32, #tpu.memory_space<vmem>>, vector<1x8x128xf32>
    %92 = vector.shape_cast %91 : vector<1x8x128xf32> to vector<8x128xf32>
    %93 = arith.addf %92, %89 : vector<8x128xf32>
    %94 = math.tanh %93 : vector<8x128xf32>
    %c4_i32_59 = arith.constant 4 : i32
    %95 = arith.truncf %94 : vector<8x128xf32> to vector<8x128xbf16>
    %cst_60 = arith.constant dense<0.000000e+00> : vector<8x128xf32>
    %96 = tpu.matmul %95, %1, %cst_60 {dimension_numbers = #tpu.dot_dimension_numbers<[1], [0], [0], [1], [0, 0, 1, 1], [], []>} : vector<8x128xbf16>, vector<128x128xbf16>, vector<8x128xf32> -> vector<8x128xf32>
    %97 = arith.index_cast %c4_i32_59 : i32 to index
    %c0_61 = arith.constant 0 : index
    %c0_62 = arith.constant 0 : index
    %98 = vector.load %arg8[%97, %c0_61, %c0_62] : memref<8x8x128xf32, #tpu.memory_space<vmem>>, vector<1x8x128xf32>
    %99 = vector.shape_cast %98 : vector<1x8x128xf32> to vector<8x128xf32>
    %100 = arith.addf %99, %96 : vector<8x128xf32>
    %101 = math.tanh %100 : vector<8x128xf32>
    %c5_i32_63 = arith.constant 5 : i32
    %102 = arith.truncf %101 : vector<8x128xf32> to vector<8x128xbf16>
    %cst_64 = arith.constant dense<0.000000e+00> : vector<8x128xf32>
    %103 = tpu.matmul %102, %1, %cst_64 {dimension_numbers = #tpu.dot_dimension_numbers<[1], [0], [0], [1], [0, 0, 1, 1], [], []>} : vector<8x128xbf16>, vector<128x128xbf16>, vector<8x128xf32> -> vector<8x128xf32>
    %104 = arith.index_cast %c5_i32_63 : i32 to index
    %c0_65 = arith.constant 0 : index
    %c0_66 = arith.constant 0 : index
    %105 = vector.load %arg8[%104, %c0_65, %c0_66] : memref<8x8x128xf32, #tpu.memory_space<vmem>>, vector<1x8x128xf32>
    %106 = vector.shape_cast %105 : vector<1x8x128xf32> to vector<8x128xf32>
    %107 = arith.addf %106, %103 : vector<8x128xf32>
    %108 = math.tanh %107 : vector<8x128xf32>
    %c6_i32_67 = arith.constant 6 : i32
    %109 = arith.truncf %108 : vector<8x128xf32> to vector<8x128xbf16>
    %cst_68 = arith.constant dense<0.000000e+00> : vector<8x128xf32>
    %110 = tpu.matmul %109, %1, %cst_68 {dimension_numbers = #tpu.dot_dimension_numbers<[1], [0], [0], [1], [0, 0, 1, 1], [], []>} : vector<8x128xbf16>, vector<128x128xbf16>, vector<8x128xf32> -> vector<8x128xf32>
    %111 = arith.index_cast %c6_i32_67 : i32 to index
    %c0_69 = arith.constant 0 : index
    %c0_70 = arith.constant 0 : index
    %112 = vector.load %arg8[%111, %c0_69, %c0_70] : memref<8x8x128xf32, #tpu.memory_space<vmem>>, vector<1x8x128xf32>
    %113 = vector.shape_cast %112 : vector<1x8x128xf32> to vector<8x128xf32>
    %114 = arith.addf %113, %110 : vector<8x128xf32>
    %115 = math.tanh %114 : vector<8x128xf32>
    %c7_i32_71 = arith.constant 7 : i32
    %116 = arith.truncf %115 : vector<8x128xf32> to vector<8x128xbf16>
    %cst_72 = arith.constant dense<0.000000e+00> : vector<8x128xf32>
    %117 = tpu.matmul %116, %1, %cst_72 {dimension_numbers = #tpu.dot_dimension_numbers<[1], [0], [0], [1], [0, 0, 1, 1], [], []>} : vector<8x128xbf16>, vector<128x128xbf16>, vector<8x128xf32> -> vector<8x128xf32>
    %118 = arith.index_cast %c7_i32_71 : i32 to index
    %c0_73 = arith.constant 0 : index
    %c0_74 = arith.constant 0 : index
    %119 = vector.load %arg8[%118, %c0_73, %c0_74] : memref<8x8x128xf32, #tpu.memory_space<vmem>>, vector<1x8x128xf32>
    %120 = vector.shape_cast %119 : vector<1x8x128xf32> to vector<8x128xf32>
    %121 = arith.addf %120, %117 : vector<8x128xf32>
    %122 = math.tanh %121 : vector<8x128xf32>
    %c8_i32_75 = arith.constant 8 : i32
    %123 = arith.truncf %122 : vector<8x128xf32> to vector<8x128xbf16>
    %c0_76 = arith.constant 0 : index
    %c0_77 = arith.constant 0 : index
    %124 = vector.load %arg4[%c0_76, %c0_77] : memref<128x128xbf16, #tpu.memory_space<vmem>>, vector<128x128xbf16>
    %cst_78 = arith.constant dense<0.000000e+00> : vector<8x128xf32>
    %125 = tpu.matmul %123, %124, %cst_78 {dimension_numbers = #tpu.dot_dimension_numbers<[1], [0], [0], [1], [0, 0, 1, 1], [], []>} : vector<8x128xbf16>, vector<128x128xbf16>, vector<8x128xf32> -> vector<8x128xf32>
    %c0_79 = arith.constant 0 : index
    %c0_80 = arith.constant 0 : index
    %126 = vector.load %arg5[%c0_79, %c0_80] : memref<1x128xf32, #tpu.memory_space<vmem>>, vector<1x128xf32>
    %127 = vector.broadcast %126 : vector<1x128xf32> to vector<8x128xf32>
    %128 = arith.addf %125, %127 : vector<8x128xf32>
    %c0_81 = arith.constant 0 : index
    %c0_82 = arith.constant 0 : index
    %129 = vector.load %arg6[%c0_81, %c0_82] : memref<8x128xf32, #tpu.memory_space<vmem>>, vector<8x128xf32>
    tpu.vector_store %arg6[%c0_81, %c0_82], %128 {strides = array<i32>} : memref<8x128xf32, #tpu.memory_space<vmem>>, vector<8x128xf32>,
    %c0_83 = arith.constant 0 : index
    %c0_84 = arith.constant 0 : index
    %130 = vector.load %arg7[%c0_83, %c0_84] : memref<8x128xf32, #tpu.memory_space<vmem>>, vector<8x128xf32>
    tpu.vector_store %arg7[%c0_83, %c0_84], %122 {strides = array<i32>} : memref<8x128xf32, #tpu.memory_space<vmem>>, vector<8x128xf32>,
    return
  }
  func.func @transform_0(%arg0: i32) -> (i32, i32, i32) {
    %c0_i32 = arith.constant 0 : i32
    %c0_i32_0 = arith.constant 0 : i32
    %c0_i32_1 = arith.constant 0 : i32
    return %c0_i32, %arg0, %c0_i32_0 : i32, i32, i32
  }
  func.func @transform_1(%arg0: i32) -> (i32, i32) {
    %c0_i32 = arith.constant 0 : i32
    %c0_i32_0 = arith.constant 0 : i32
    %c0_i32_1 = arith.constant 0 : i32
    return %c0_i32, %c0_i32_0 : i32, i32
  }
  func.func @transform_2(%arg0: i32) -> (i32, i32) {
    %c0_i32 = arith.constant 0 : i32
    %c0_i32_0 = arith.constant 0 : i32
    %c0_i32_1 = arith.constant 0 : i32
    return %c0_i32, %c0_i32_0 : i32, i32
  }
  func.func @transform_3(%arg0: i32) -> (i32, i32) {
    %c0_i32 = arith.constant 0 : i32
    %c0_i32_0 = arith.constant 0 : i32
    %c0_i32_1 = arith.constant 0 : i32
    return %c0_i32, %c0_i32_0 : i32, i32
  }
  func.func @transform_4(%arg0: i32) -> (i32, i32) {
    %c0_i32 = arith.constant 0 : i32
    %c0_i32_0 = arith.constant 0 : i32
    %c0_i32_1 = arith.constant 0 : i32
    return %c0_i32, %c0_i32_0 : i32, i32
  }
  func.func @transform_5(%arg0: i32) -> (i32, i32) {
    %c0_i32 = arith.constant 0 : i32
    %c0_i32_0 = arith.constant 0 : i32
    return %arg0, %c0_i32 : i32, i32
  }
  func.func @transform_6(%arg0: i32) -> (i32, i32) {
    %c0_i32 = arith.constant 0 : i32
    %c0_i32_0 = arith.constant 0 : i32
    return %arg0, %c0_i32 : i32, i32
  }
}

</mosaic_0001>

<llo_original>
// kernel: tpu_custom_call.1
$region0: #{tpu_custom_call.1}
  #allocation0 [shape = 'u32[]', space=smem, size = 0x4, offset = 0x4, fixed_abs, tag = 'smem constant byte address 0x4 - core index']
  #allocation1 [shape = 'u32[144,128]{1,0:T(1,128)}', space=vmem, size = 0x12000, scoped, tag = 'internal scratch']
  #allocation2 [shape = 'f32[8,8,128]{2,1,0:T(8,128)}', space=vmem, size = 0x8000, scoped, tag = 'scratch operand']
  %s0 = inlined_call_operand.hbm [shape: bf16[8,8,8], index: 0, kind: input, shape index: {}]
  %s1 = inlined_call_operand.hbm [shape: bf16[8,128], index: 1, kind: input, shape index: {}]
  %s2 = inlined_call_operand.hbm [shape: bf16[128,128], index: 2, kind: input, shape index: {}]
  %s3 = inlined_call_operand.hbm [shape: bf16[128,128], index: 3, kind: input, shape index: {}]
  %s4 = inlined_call_operand.vmem [shape: f32[1,128], index: 4, kind: input, shape index: {}]
  %s5 = inlined_call_operand.hbm [shape: f32[8,128], index: 5, kind: output, shape index: {0}]
  %s6 = inlined_call_operand.hbm [shape: f32[8,128], index: 6, kind: output, shape index: {1}]
  %7 = xla_tuple %s5, %s6
  %s8 = sld [smem:[#allocation0]]
  $region54: #{tpu_custom_call.1} parent=0
    _
  %s10 = ssub.s32 1, %s8
  %s11 = scalar_select 0, %s10, %s8
  $region1: #{tpu_custom_call.1} parent=0
    #allocation3 [shape = 'u8[16384]{0}', space=vmem, size = 0x4000, scoped, tag = 'input window, operand 0, single buffered']
    #allocation4 [shape = 's32[1]{0}', space=sflag, size = 0x4, scoped, tag = 'scoped memory for tpu_custom_call.1']
    #allocation5 [shape = 's32[1]{0}', space=sflag, size = 0x4, scoped, tag = 'scoped memory for tpu_custom_call.1']
    #allocation6 [shape = 'u8[2048]{0}', space=vmem, size = 0x800, scoped, tag = 'input window, operand 1, single buffered']
    #allocation7 [shape = 's32[1]{0}', space=sflag, size = 0x4, scoped, tag = 'scoped memory for tpu_custom_call.1']
    #allocation8 [shape = 'u8[32768]{0}', space=vmem, size = 0x8000, scoped, tag = 'input window, operand 2, single buffered']
    #allocation9 [shape = 'u8[32768]{0}', space=vmem, size = 0x8000, scoped, tag = 'input window, operand 3, single buffered']
    #allocation10 [shape = 's32[1]{0}', space=sflag, size = 0x4, scoped, tag = 'scoped memory for tpu_custom_call.1']
    #allocation11 [shape = 'u8[4096]{0}', space=vmem, size = 0x1000, scoped, tag = 'output window, operand 0, single buffered']
    #allocation12 [shape = 'u8[4096]{0}', space=vmem, size = 0x1000, scoped, tag = 'output window, operand 1, single buffered']
    #allocation13 [shape = 's32[1]{0}', space=sflag, size = 0x4, scoped, tag = 'scoped memory for tpu_custom_call.1']
    %12 = vsyncpa [#allocation4], 0
    %13 = vsyncpa [#allocation7], 0
    %14 = vsyncpa [#allocation10], 0
    %15 = vsyncpa [#allocation5], 0
    %16 = vsyncpa [#allocation13], 0
    // Predicated region
    $region2: #{tpu_custom_call.1} parent=1 // pred_check
      _
    $region3: #{tpu_custom_call.1} parent=1 // pred_check_branch
      %18 = sbr.rel (0) target = $region5
    $region4: #{tpu_custom_call.1} parent=1 // pred_region
      %s20 = ssub.s32 512, 512
      %21 = vsyncadd [#allocation4], %s20
      %s22 = sshll.u32 [#allocation3], 4
      %s23 = int_to_ptr.vmem [resolvable:$true] %s22
      %28 = dma.hbm_to_vmem [thread:$0]  %s0, 512, %s23, [#allocation4], 64, 64, 4
    $region5: #{tpu_custom_call.1} parent=1 // pred_fallthru
      _
    // Predicated region
    $region6: #{tpu_custom_call.1} parent=1 // pred_check
      _
    $region7: #{tpu_custom_call.1} parent=1 // pred_check_branch
      %30 = sbr.rel (0) target = $region9
    $region8: #{tpu_custom_call.1} parent=1 // pred_region
      %s32 = ssub.s32 64, 64
      %33 = vsyncadd [#allocation7], %s32
      %s35 = sshll.u32 [#allocation6], 4
      %s36 = int_to_ptr.vmem [resolvable:$true] %s35
      %38 = dma.hbm_to_vmem [thread:$0]  %s1, 64, %s36, [#allocation7]
    $region9: #{tpu_custom_call.1} parent=1 // pred_fallthru
      _
    // Predicated region
    $region10: #{tpu_custom_call.1} parent=1 // pred_check
      _
    $region11: #{tpu_custom_call.1} parent=1 // pred_check_branch
      %40 = sbr.rel (0) target = $region13
    $region12: #{tpu_custom_call.1} parent=1 // pred_region
      %s42 = ssub.s32 1024, 1024
      %43 = vsyncadd [#allocation7], %s42
      %s44 = sshll.u32 [#allocation8], 4
      %s45 = int_to_ptr.vmem [resolvable:$true] %s44
      %50 = dma.hbm_to_vmem [thread:$0]  %s2, 1024, %s45, [#allocation7], 64, 64, 4
    $region13: #{tpu_custom_call.1} parent=1 // pred_fallthru
      _
    // Predicated region
    $region14: #{tpu_custom_call.1} parent=1 // pred_check
      _
    $region15: #{tpu_custom_call.1} parent=1 // pred_check_branch
      %52 = sbr.rel (0) target = $region17
    $region16: #{tpu_custom_call.1} parent=1 // pred_region
      %s54 = ssub.s32 1024, 1024
      %55 = vsyncadd [#allocation10], %s54
      %s56 = sshll.u32 [#allocation9], 4
      %s57 = int_to_ptr.vmem [resolvable:$true] %s56
      %62 = dma.hbm_to_vmem [thread:$0]  %s3, 1024, %s57, [#allocation10], 64, 64, 4
    $region17: #{tpu_custom_call.1} parent=1 // pred_fallthru
      _
    // Predicated region
    $region18: #{tpu_custom_call.1} parent=1 // pred_check
      _
    $region19: #{tpu_custom_call.1} parent=1 // pred_check_branch
      %64 = sbr.rel (0) target = $region21
    $region20: #{tpu_custom_call.1} parent=1 // pred_region
      _
    $region21: #{tpu_custom_call.1} parent=1 // pred_fallthru
      _
    // Predicated region
    $region22: #{tpu_custom_call.1} parent=1 // pred_check
      _
    $region23: #{tpu_custom_call.1} parent=1 // pred_check_branch
      %66 = sbr.rel (0) target = $region25
    $region24: #{tpu_custom_call.1} parent=1 // pred_region
      %67 = dma.done [#allocation4], 512
    $region25: #{tpu_custom_call.1} parent=1 // pred_fallthru
      _
    // Predicated region
    $region26: #{tpu_custom_call.1} parent=1 // pred_check
      _
    $region27: #{tpu_custom_call.1} parent=1 // pred_check_branch
      %69 = sbr.rel (0) target = $region29
    $region28: #{tpu_custom_call.1} parent=1 // pred_region
      %70 = dma.done [#allocation7], 64
    $region29: #{tpu_custom_call.1} parent=1 // pred_fallthru
      _
    // Predicated region
    $region30: #{tpu_custom_call.1} parent=1 // pred_check
      _
    $region31: #{tpu_custom_call.1} parent=1 // pred_check_branch
      %72 = sbr.rel (0) target = $region33
    $region32: #{tpu_custom_call.1} parent=1 // pred_region
      %73 = dma.done [#allocation7], 1024
    $region33: #{tpu_custom_call.1} parent=1 // pred_fallthru
      _
    // Predicated region
    $region34: #{tpu_custom_call.1} parent=1 // pred_check
      _
    $region35: #{tpu_custom_call.1} parent=1 // pred_check_branch
      %75 = sbr.rel (0) target = $region37
    $region36: #{tpu_custom_call.1} parent=1 // pred_region
      %76 = dma.done [#allocation10], 1024
    $region37: #{tpu_custom_call.1} parent=1 // pred_fallthru
      _
    %v78 = vld [vmem:[#allocation6] sm:$0xf]
    %v79 = vld [vmem:[#allocation8] sm:$0xf]
    %v80 = vld [vmem:[#allocation8 + $0x4] sm:$0xf]
    %v81 = vld [vmem:[#allocation8 + $0x8] sm:$0xf]
    %v82 = vld [vmem:[#allocation8 + $0xc] sm:$0xf]
    %v83 = vld [vmem:[#allocation8 + $0x10] sm:$0xf]
    %v84 = vld [vmem:[#allocation8 + $0x14] sm:$0xf]
    %v85 = vld [vmem:[#allocation8 + $0x18] sm:$0xf]
    %v86 = vld [vmem:[#allocation8 + $0x1c] sm:$0xf]
    %v87 = vld [vmem:[#allocation8 + $0x20] sm:$0xf]
    %v88 = vld [vmem:[#allocation8 + $0x24] sm:$0xf]
    %v89 = vld [vmem:[#allocation8 + $0x28] sm:$0xf]
    %v90 = vld [vmem:[#allocation8 + $0x2c] sm:$0xf]
    %v91 = vld [vmem:[#allocation8 + $0x30] sm:$0xf]
    %v92 = vld [vmem:[#allocation8 + $0x34] sm:$0xf]
    %v93 = vld [vmem:[#allocation8 + $0x38] sm:$0xf]
    %v94 = vld [vmem:[#allocation8 + $0x3c] sm:$0xf]
    %v95 = vld [vmem:[#allocation3] sm:$0xf]
    %vm96 = vcmask 64512
    %v98 = vsel %vm96, %v95, 0
    %vm100 = vcmask 1043456
    %v102 = vsel %vm100, %v78, 0
    %104 = vmatprep.subr.bf16.mxu0 0
    %105 = vmatpush1.bf16.msra.mxu0 %v102
    %106 = vmatprep.subr.bf16.mxu0 0
    %107 = vmatpush1.bf16.msra.mxu0 0
    %108 = vmatprep.subr.bf16.mxu0 0
    %109 = vmatpush1.bf16.msra.mxu0 0
    %110 = vmatprep.subr.bf16.mxu0 0
    %111 = vmatpush1.bf16.msra.mxu0 0
    %112 = vmatprep.subr.bf16.mxu0 0
    %113 = vmatpush1.bf16.msra.mxu0 0
    %114 = vmatprep.subr.bf16.mxu0 0
    %115 = vmatpush1.bf16.msra.mxu0 0
    %116 = vmatprep.subr.bf16.mxu0 0
    %117 = vmatpush1.bf16.msra.mxu0 0
    %118 = vmatprep.subr.bf16.mxu0 0
    %119 = vmatpush1.bf16.msra.mxu0 0
    %120 = vmatprep.subr.bf16.mxu0 0
    %121 = vmatpush1.bf16.msra.mxu0 0
    %122 = vmatprep.subr.bf16.mxu0 0
    %123 = vmatpush1.bf16.msra.mxu0 0
    %124 = vmatprep.subr.bf16.mxu0 0
    %125 = vmatpush1.bf16.msra.mxu0 0
    %126 = vmatprep.subr.bf16.mxu0 0
    %127 = vmatpush1.bf16.msra.mxu0 0
    %128 = vmatprep.subr.bf16.mxu0 0
    %129 = vmatpush1.bf16.msra.mxu0 0
    %130 = vmatprep.subr.bf16.mxu0 0
    %131 = vmatpush1.bf16.msra.mxu0 0
    %132 = vmatprep.subr.bf16.mxu0 0
    %133 = vmatpush1.bf16.msra.mxu0 0
    %134 = vmatprep.subr.bf16.mxu0 0
    %135 = vmatpush1.bf16.msra.mxu0 0
    %136 = vmatprep.mubr.bf16.mxu0 0
    %137 = vmatmul.mubr.bf16.gmra.mrb[0].mxu0 %v98
    %v138 = vpop.f32.mrb[0].mxu0
    %v139 = vadd.f32 0.0, %v138
    %v140 = vpop.f32.mrb[0].mxu0
    %v141 = vpop.f32.mrb[0].mxu0
    %v142 = vpop.f32.mrb[0].mxu0
    %143 = vdwg.mxu0
    %144 = vst [vmem:[#allocation2] sm:$0xff] %v139
    %s145 = scalar_lea.vmem [#allocation3], 4
    %v146 = vld [vmem:[%s145] sm:$0xf]
    %v148 = vsel %vm96, %v146, 0
    %150 = vmatprep.subr.bf16.mxu0 0
    %151 = vmatpush1.bf16.msra.mxu0 %v102
    %152 = vmatprep.subr.bf16.mxu0 0
    %153 = vmatpush1.bf16.msra.mxu0 0
    %154 = vmatprep.subr.bf16.mxu0 0
    %155 = vmatpush1.bf16.msra.mxu0 0
    %156 = vmatprep.subr.bf16.mxu0 0
    %157 = vmatpush1.bf16.msra.mxu0 0
    %158 = vmatprep.subr.bf16.mxu0 0
    %159 = vmatpush1.bf16.msra.mxu0 0
    %160 = vmatprep.subr.bf16.mxu0 0
    %161 = vmatpush1.bf16.msra.mxu0 0
    %162 = vmatprep.subr.bf16.mxu0 0
    %163 = vmatpush1.bf16.msra.mxu0 0
    %164 = vmatprep.subr.bf16.mxu0 0
    %165 = vmatpush1.bf16.msra.mxu0 0
    %166 = vmatprep.subr.bf16.mxu0 0
    %167 = vmatpush1.bf16.msra.mxu0 0
    %168 = vmatprep.subr.bf16.mxu0 0
    %169 = vmatpush1.bf16.msra.mxu0 0
    %170 = vmatprep.subr.bf16.mxu0 0
    %171 = vmatpush1.bf16.msra.mxu0 0
    %172 = vmatprep.subr.bf16.mxu0 0
    %173 = vmatpush1.bf16.msra.mxu0 0
    %174 = vmatprep.subr.bf16.mxu0 0
    %175 = vmatpush1.bf16.msra.mxu0 0
    %176 = vmatprep.subr.bf16.mxu0 0
    %177 = vmatpush1.bf16.msra.mxu0 0
    %178 = vmatprep.subr.bf16.mxu0 0
    %179 = vmatpush1.bf16.msra.mxu0 0
    %180 = vmatprep.subr.bf16.mxu0 0
    %181 = vmatpush1.bf16.msra.mxu0 0
    %182 = vmatprep.mubr.bf16.mxu0 0
    %183 = vmatmul.mubr.bf16.gmra.mrb[0].mxu0 %v148
    %v184 = vpop.f32.mrb[0].mxu0
    %v185 = vadd.f32 0.0, %v184
    %v186 = vpop.f32.mrb[0].mxu0
    %v187 = vpop.f32.mrb[0].mxu0
    %v188 = vpop.f32.mrb[0].mxu0
    %189 = vdwg.mxu0
    %s190 = scalar_lea.vmem [#allocation2], 8
    %191 = vst [vmem:[%s190] sm:$0xff] %v185
    %s192 = scalar_lea.vmem [#allocation3], 8
    %v193 = vld [vmem:[%s192] sm:$0xf]
    %v195 = vsel %vm96, %v193, 0
    %197 = vmatprep.subr.bf16.mxu0 0
    %198 = vmatpush1.bf16.msra.mxu0 %v102
    %199 = vmatprep.subr.bf16.mxu0 0
    %200 = vmatpush1.bf16.msra.mxu0 0
    %201 = vmatprep.subr.bf16.mxu0 0
    %202 = vmatpush1.bf16.msra.mxu0 0
    %203 = vmatprep.subr.bf16.mxu0 0
    %204 = vmatpush1.bf16.msra.mxu0 0
    %205 = vmatprep.subr.bf16.mxu0 0
    %206 = vmatpush1.bf16.msra.mxu0 0
    %207 = vmatprep.subr.bf16.mxu0 0
    %208 = vmatpush1.bf16.msra.mxu0 0
    %209 = vmatprep.subr.bf16.mxu0 0
    %210 = vmatpush1.bf16.msra.mxu0 0
    %211 = vmatprep.subr.bf16.mxu0 0
    %212 = vmatpush1.bf16.msra.mxu0 0
    %213 = vmatprep.subr.bf16.mxu0 0
    %214 = vmatpush1.bf16.msra.mxu0 0
    %215 = vmatprep.subr.bf16.mxu0 0
    %216 = vmatpush1.bf16.msra.mxu0 0
    %217 = vmatprep.subr.bf16.mxu0 0
    %218 = vmatpush1.bf16.msra.mxu0 0
    %219 = vmatprep.subr.bf16.mxu0 0
    %220 = vmatpush1.bf16.msra.mxu0 0
    %221 = vmatprep.subr.bf16.mxu0 0
    %222 = vmatpush1.bf16.msra.mxu0 0
    %223 = vmatprep.subr.bf16.mxu0 0
    %224 = vmatpush1.bf16.msra.mxu0 0
    %225 = vmatprep.subr.bf16.mxu0 0
    %226 = vmatpush1.bf16.msra.mxu0 0
    %227 = vmatprep.subr.bf16.mxu0 0
    %228 = vmatpush1.bf16.msra.mxu0 0
    %229 = vmatprep.mubr.bf16.mxu0 0
    %230 = vmatmul.mubr.bf16.gmra.mrb[0].mxu0 %v195
    %v231 = vpop.f32.mrb[0].mxu0
    %v232 = vadd.f32 0.0, %v231
    %v233 = vpop.f32.mrb[0].mxu0
    %v234 = vpop.f32.mrb[0].mxu0
    %v235 = vpop.f32.mrb[0].mxu0
    %236 = vdwg.mxu0
    %s237 = scalar_lea.vmem [#allocation2], 16
    %238 = vst [vmem:[%s237] sm:$0xff] %v232
    %s239 = scalar_lea.vmem [#allocation3], 12
    %v240 = vld [vmem:[%s239] sm:$0xf]
    %v242 = vsel %vm96, %v240, 0
    %244 = vmatprep.subr.bf16.mxu0 0
    %245 = vmatpush1.bf16.msra.mxu0 %v102
    %246 = vmatprep.subr.bf16.mxu0 0
    %247 = vmatpush1.bf16.msra.mxu0 0
    %248 = vmatprep.subr.bf16.mxu0 0
    %249 = vmatpush1.bf16.msra.mxu0 0
    %250 = vmatprep.subr.bf16.mxu0 0
    %251 = vmatpush1.bf16.msra.mxu0 0
    %252 = vmatprep.subr.bf16.mxu0 0
    %253 = vmatpush1.bf16.msra.mxu0 0
    %254 = vmatprep.subr.bf16.mxu0 0
    %255 = vmatpush1.bf16.msra.mxu0 0
    %256 = vmatprep.subr.bf16.mxu0 0
    %257 = vmatpush1.bf16.msra.mxu0 0
    %258 = vmatprep.subr.bf16.mxu0 0
    %259 = vmatpush1.bf16.msra.mxu0 0
    %260 = vmatprep.subr.bf16.mxu0 0
    %261 = vmatpush1.bf16.msra.mxu0 0
    %262 = vmatprep.subr.bf16.mxu0 0
    %263 = vmatpush1.bf16.msra.mxu0 0
    %264 = vmatprep.subr.bf16.mxu0 0
    %265 = vmatpush1.bf16.msra.mxu0 0
    %266 = vmatprep.subr.bf16.mxu0 0
    %267 = vmatpush1.bf16.msra.mxu0 0
    %268 = vmatprep.subr.bf16.mxu0 0
    %269 = vmatpush1.bf16.msra.mxu0 0
    %270 = vmatprep.subr.bf16.mxu0 0
    %271 = vmatpush1.bf16.msra.mxu0 0
    %272 = vmatprep.subr.bf16.mxu0 0
    %273 = vmatpush1.bf16.msra.mxu0 0
    %274 = vmatprep.subr.bf16.mxu0 0
    %275 = vmatpush1.bf16.msra.mxu0 0
    %276 = vmatprep.mubr.bf16.mxu0 0
    %277 = vmatmul.mubr.bf16.gmra.mrb[0].mxu0 %v242
    %v278 = vpop.f32.mrb[0].mxu0
    %v279 = vadd.f32 0.0, %v278
    %v280 = vpop.f32.mrb[0].mxu0
    %v281 = vpop.f32.mrb[0].mxu0
    %v282 = vpop.f32.mrb[0].mxu0
    %283 = vdwg.mxu0
    %s284 = scalar_lea.vmem [#allocation2], 24
    %285 = vst [vmem:[%s284] sm:$0xff] %v279
    %s286 = scalar_lea.vmem [#allocation3], 16
    %v287 = vld [vmem:[%s286] sm:$0xf]
    %v289 = vsel %vm96, %v287, 0
    %291 = vmatprep.subr.bf16.mxu0 0
    %292 = vmatpush1.bf16.msra.mxu0 %v102
    %293 = vmatprep.subr.bf16.mxu0 0
    %294 = vmatpush1.bf16.msra.mxu0 0
    %295 = vmatprep.subr.bf16.mxu0 0
    %296 = vmatpush1.bf16.msra.mxu0 0
    %297 = vmatprep.subr.bf16.mxu0 0
    %298 = vmatpush1.bf16.msra.mxu0 0
    %299 = vmatprep.subr.bf16.mxu0 0
    %300 = vmatpush1.bf16.msra.mxu0 0
    %301 = vmatprep.subr.bf16.mxu0 0
    %302 = vmatpush1.bf16.msra.mxu0 0
    %303 = vmatprep.subr.bf16.mxu0 0
    %304 = vmatpush1.bf16.msra.mxu0 0
    %305 = vmatprep.subr.bf16.mxu0 0
    %306 = vmatpush1.bf16.msra.mxu0 0
    %307 = vmatprep.subr.bf16.mxu0 0
    %308 = vmatpush1.bf16.msra.mxu0 0
    %309 = vmatprep.subr.bf16.mxu0 0
    %310 = vmatpush1.bf16.msra.mxu0 0
    %311 = vmatprep.subr.bf16.mxu0 0
    %312 = vmatpush1.bf16.msra.mxu0 0
    %313 = vmatprep.subr.bf16.mxu0 0
    %314 = vmatpush1.bf16.msra.mxu0 0
    %315 = vmatprep.subr.bf16.mxu0 0
    %316 = vmatpush1.bf16.msra.mxu0 0
    %317 = vmatprep.subr.bf16.mxu0 0
    %318 = vmatpush1.bf16.msra.mxu0 0
    %319 = vmatprep.subr.bf16.mxu0 0
    %320 = vmatpush1.bf16.msra.mxu0 0
    %321 = vmatprep.subr.bf16.mxu0 0
    %322 = vmatpush1.bf16.msra.mxu0 0
    %323 = vmatprep.mubr.bf16.mxu0 0
    %324 = vmatmul.mubr.bf16.gmra.mrb[0].mxu0 %v289
    %v325 = vpop.f32.mrb[0].mxu0
    %v326 = vadd.f32 0.0, %v325
    %v327 = vpop.f32.mrb[0].mxu0
    %v328 = vpop.f32.mrb[0].mxu0
    %v329 = vpop.f32.mrb[0].mxu0
    %330 = vdwg.mxu0
    %s331 = scalar_lea.vmem [#allocation2], 32
    %332 = vst [vmem:[%s331] sm:$0xff] %v326
    %s333 = scalar_lea.vmem [#allocation3], 20
    %v334 = vld [vmem:[%s333] sm:$0xf]
    %v336 = vsel %vm96, %v334, 0
    %338 = vmatprep.subr.bf16.mxu0 0
    %339 = vmatpush1.bf16.msra.mxu0 %v102
    %340 = vmatprep.subr.bf16.mxu0 0
    %341 = vmatpush1.bf16.msra.mxu0 0
    %342 = vmatprep.subr.bf16.mxu0 0
    %343 = vmatpush1.bf16.msra.mxu0 0
    %344 = vmatprep.subr.bf16.mxu0 0
    %345 = vmatpush1.bf16.msra.mxu0 0
    %346 = vmatprep.subr.bf16.mxu0 0
    %347 = vmatpush1.bf16.msra.mxu0 0
    %348 = vmatprep.subr.bf16.mxu0 0
    %349 = vmatpush1.bf16.msra.mxu0 0
    %350 = vmatprep.subr.bf16.mxu0 0
    %351 = vmatpush1.bf16.msra.mxu0 0
    %352 = vmatprep.subr.bf16.mxu0 0
    %353 = vmatpush1.bf16.msra.mxu0 0
    %354 = vmatprep.subr.bf16.mxu0 0
    %355 = vmatpush1.bf16.msra.mxu0 0
    %356 = vmatprep.subr.bf16.mxu0 0
    %357 = vmatpush1.bf16.msra.mxu0 0
    %358 = vmatprep.subr.bf16.mxu0 0
    %359 = vmatpush1.bf16.msra.mxu0 0
    %360 = vmatprep.subr.bf16.mxu0 0
    %361 = vmatpush1.bf16.msra.mxu0 0
    %362 = vmatprep.subr.bf16.mxu0 0
    %363 = vmatpush1.bf16.msra.mxu0 0
    %364 = vmatprep.subr.bf16.mxu0 0
    %365 = vmatpush1.bf16.msra.mxu0 0
    %366 = vmatprep.subr.bf16.mxu0 0
    %367 = vmatpush1.bf16.msra.mxu0 0
    %368 = vmatprep.subr.bf16.mxu0 0
    %369 = vmatpush1.bf16.msra.mxu0 0
    %370 = vmatprep.mubr.bf16.mxu0 0
    %371 = vmatmul.mubr.bf16.gmra.mrb[0].mxu0 %v336
    %v372 = vpop.f32.mrb[0].mxu0
    %v373 = vadd.f32 0.0, %v372
    %v374 = vpop.f32.mrb[0].mxu0
    %v375 = vpop.f32.mrb[0].mxu0
    %v376 = vpop.f32.mrb[0].mxu0
    %377 = vdwg.mxu0
    %s378 = scalar_lea.vmem [#allocation2], 40
    %379 = vst [vmem:[%s378] sm:$0xff] %v373
    %s380 = scalar_lea.vmem [#allocation3], 24
    %v381 = vld [vmem:[%s380] sm:$0xf]
    %v383 = vsel %vm96, %v381, 0
    %385 = vmatprep.subr.bf16.mxu0 0
    %386 = vmatpush1.bf16.msra.mxu0 %v102
    %387 = vmatprep.subr.bf16.mxu0 0
    %388 = vmatpush1.bf16.msra.mxu0 0
    %389 = vmatprep.subr.bf16.mxu0 0
    %390 = vmatpush1.bf16.msra.mxu0 0
    %391 = vmatprep.subr.bf16.mxu0 0
    %392 = vmatpush1.bf16.msra.mxu0 0
    %393 = vmatprep.subr.bf16.mxu0 0
    %394 = vmatpush1.bf16.msra.mxu0 0
    %395 = vmatprep.subr.bf16.mxu0 0
    %396 = vmatpush1.bf16.msra.mxu0 0
    %397 = vmatprep.subr.bf16.mxu0 0
    %398 = vmatpush1.bf16.msra.mxu0 0
    %399 = vmatprep.subr.bf16.mxu0 0
    %400 = vmatpush1.bf16.msra.mxu0 0
    %401 = vmatprep.subr.bf16.mxu0 0
    %402 = vmatpush1.bf16.msra.mxu0 0
    %403 = vmatprep.subr.bf16.mxu0 0
    %404 = vmatpush1.bf16.msra.mxu0 0
    %405 = vmatprep.subr.bf16.mxu0 0
    %406 = vmatpush1.bf16.msra.mxu0 0
    %407 = vmatprep.subr.bf16.mxu0 0
    %408 = vmatpush1.bf16.msra.mxu0 0
    %409 = vmatprep.subr.bf16.mxu0 0
    %410 = vmatpush1.bf16.msra.mxu0 0
    %411 = vmatprep.subr.bf16.mxu0 0
    %412 = vmatpush1.bf16.msra.mxu0 0
    %413 = vmatprep.subr.bf16.mxu0 0
    %414 = vmatpush1.bf16.msra.mxu0 0
    %415 = vmatprep.subr.bf16.mxu0 0
    %416 = vmatpush1.bf16.msra.mxu0 0
    %417 = vmatprep.mubr.bf16.mxu0 0
    %418 = vmatmul.mubr.bf16.gmra.mrb[0].mxu0 %v383
    %v419 = vpop.f32.mrb[0].mxu0
    %v420 = vadd.f32 0.0, %v419
    %v421 = vpop.f32.mrb[0].mxu0
    %v422 = vpop.f32.mrb[0].mxu0
    %v423 = vpop.f32.mrb[0].mxu0
    %424 = vdwg.mxu0
    %s425 = scalar_lea.vmem [#allocation2], 48
    %426 = vst [vmem:[%s425] sm:$0xff] %v420
    %s427 = scalar_lea.vmem [#allocation3], 28
    %v428 = vld [vmem:[%s427] sm:$0xf]
    %v430 = vsel %vm96, %v428, 0
    %432 = vmatprep.subr.bf16.mxu0 0
    %433 = vmatpush1.bf16.msra.mxu0 %v102
    %434 = vmatprep.subr.bf16.mxu0 0
    %435 = vmatpush1.bf16.msra.mxu0 0
    %436 = vmatprep.subr.bf16.mxu0 0
    %437 = vmatpush1.bf16.msra.mxu0 0
    %438 = vmatprep.subr.bf16.mxu0 0
    %439 = vmatpush1.bf16.msra.mxu0 0
    %440 = vmatprep.subr.bf16.mxu0 0
    %441 = vmatpush1.bf16.msra.mxu0 0
    %442 = vmatprep.subr.bf16.mxu0 0
    %443 = vmatpush1.bf16.msra.mxu0 0
    %444 = vmatprep.subr.bf16.mxu0 0
    %445 = vmatpush1.bf16.msra.mxu0 0
    %446 = vmatprep.subr.bf16.mxu0 0
    %447 = vmatpush1.bf16.msra.mxu0 0
    %448 = vmatprep.subr.bf16.mxu0 0
    %449 = vmatpush1.bf16.msra.mxu0 0
    %450 = vmatprep.subr.bf16.mxu0 0
    %451 = vmatpush1.bf16.msra.mxu0 0
    %452 = vmatprep.subr.bf16.mxu0 0
    %453 = vmatpush1.bf16.msra.mxu0 0
    %454 = vmatprep.subr.bf16.mxu0 0
    %455 = vmatpush1.bf16.msra.mxu0 0
    %456 = vmatprep.subr.bf16.mxu0 0
    %457 = vmatpush1.bf16.msra.mxu0 0
    %458 = vmatprep.subr.bf16.mxu0 0
    %459 = vmatpush1.bf16.msra.mxu0 0
    %460 = vmatprep.subr.bf16.mxu0 0
    %461 = vmatpush1.bf16.msra.mxu0 0
    %462 = vmatprep.subr.bf16.mxu0 0
    %463 = vmatpush1.bf16.msra.mxu0 0
    %464 = vmatprep.mubr.bf16.mxu0 0
    %465 = vmatmul.mubr.bf16.gmra.mrb[0].mxu0 %v430
    %v466 = vpop.f32.mrb[0].mxu0
    %v467 = vadd.f32 0.0, %v466
    %v468 = vpop.f32.mrb[0].mxu0
    %v469 = vpop.f32.mrb[0].mxu0
    %v470 = vpop.f32.mrb[0].mxu0
    %471 = vdwg.mxu0
    %s472 = scalar_lea.vmem [#allocation2], 56
    %473 = vst [vmem:[%s472] sm:$0xff] %v467
    %v490 = vunpack.c.l.b16 %v79
    %v491 = vunpack.c.l.b16 %v80
    %v492 = vunpack.c.l.b16 %v81
    %v493 = vunpack.c.l.b16 %v82
    %v494 = vunpack.c.l.b16 %v83
    %v495 = vunpack.c.l.b16 %v84
    %v496 = vunpack.c.l.b16 %v85
    %v497 = vunpack.c.l.b16 %v86
    %v498 = vunpack.c.l.b16 %v87
    %v499 = vunpack.c.l.b16 %v88
    %v500 = vunpack.c.l.b16 %v89
    %v501 = vunpack.c.l.b16 %v90
    %v502 = vunpack.c.l.b16 %v91
    %v503 = vunpack.c.l.b16 %v92
    %v504 = vunpack.c.l.b16 %v93
    %v505 = vunpack.c.l.b16 %v94
    %v506 = vpack.c.b16 %v491, %v490
    %v507 = vpack.c.b16 %v493, %v492
    %v508 = vpack.c.b16 %v495, %v494
    %v509 = vpack.c.b16 %v497, %v496
    %v510 = vpack.c.b16 %v499, %v498
    %v511 = vpack.c.b16 %v501, %v500
    %v512 = vpack.c.b16 %v503, %v502
    %v513 = vpack.c.b16 %v505, %v504
    %522 = vmatprep.subr.bf16.mxu0 0
    %523 = vmatpush1.bf16.msra.mxu0 %v506
    %524 = vmatprep.subr.bf16.mxu0 0
    %525 = vmatpush1.bf16.msra.mxu0 %v507
    %526 = vmatprep.subr.bf16.mxu0 0
    %527 = vmatpush1.bf16.msra.mxu0 %v508
    %528 = vmatprep.subr.bf16.mxu0 0
    %529 = vmatpush1.bf16.msra.mxu0 %v509
    %530 = vmatprep.subr.bf16.mxu0 0
    %531 = vmatpush1.bf16.msra.mxu0 %v510
    %532 = vmatprep.subr.bf16.mxu0 0
    %533 = vmatpush1.bf16.msra.mxu0 %v511
    %534 = vmatprep.subr.bf16.mxu0 0
    %535 = vmatpush1.bf16.msra.mxu0 %v512
    %536 = vmatprep.subr.bf16.mxu0 0
    %537 = vmatpush1.bf16.msra.mxu0 %v513
    %538 = vmatprep.subr.bf16.mxu0 0
    %539 = vmatpush1.bf16.msra.mxu0 0
    %540 = vmatprep.subr.bf16.mxu0 0
    %541 = vmatpush1.bf16.msra.mxu0 0
    %542 = vmatprep.subr.bf16.mxu0 0
    %543 = vmatpush1.bf16.msra.mxu0 0
    %544 = vmatprep.subr.bf16.mxu0 0
    %545 = vmatpush1.bf16.msra.mxu0 0
    %546 = vmatprep.subr.bf16.mxu0 0
    %547 = vmatpush1.bf16.msra.mxu0 0
    %548 = vmatprep.subr.bf16.mxu0 0
    %549 = vmatpush1.bf16.msra.mxu0 0
    %550 = vmatprep.subr.bf16.mxu0 0
    %551 = vmatpush1.bf16.msra.mxu0 0
    %552 = vmatprep.subr.bf16.mxu0 0
    %553 = vmatpush1.bf16.msra.mxu0 0
    %554 = vmatprep.mubr.bf16.mxu0 0
    %555 = vmatmul.mubr.bf16.gmra.mrb[0].mxu0 0
    %v556 = vpop.f32.mrb[0].mxu0
    %v557 = vadd.f32 0.0, %v556
    %v558 = vpop.f32.mrb[0].mxu0
    %v559 = vpop.f32.mrb[0].mxu0
    %v560 = vpop.f32.mrb[0].mxu0
    %561 = vdwg.mxu0
    %v562 = vld [vmem:[#allocation2] sm:$0xff]
    %v563 = vadd.f32 %v562, %v557
    %v564 = vtanh.pop %v563
    %v565 = vpack.c.bf16 %v564, %v564
    %566 = vmatprep.subr.bf16.mxu0 0
    %567 = vmatpush1.bf16.msra.mxu0 %v506
    %568 = vmatprep.subr.bf16.mxu0 0
    %569 = vmatpush1.bf16.msra.mxu0 %v507
    %570 = vmatprep.subr.bf16.mxu0 0
    %571 = vmatpush1.bf16.msra.mxu0 %v508
    %572 = vmatprep.subr.bf16.mxu0 0
    %573 = vmatpush1.bf16.msra.mxu0 %v509
    %574 = vmatprep.subr.bf16.mxu0 0
    %575 = vmatpush1.bf16.msra.mxu0 %v510
    %576 = vmatprep.subr.bf16.mxu0 0
    %577 = vmatpush1.bf16.msra.mxu0 %v511
    %578 = vmatprep.subr.bf16.mxu0 0
    %579 = vmatpush1.bf16.msra.mxu0 %v512
    %580 = vmatprep.subr.bf16.mxu0 0
    %581 = vmatpush1.bf16.msra.mxu0 %v513
    %582 = vmatprep.subr.bf16.mxu0 0
    %583 = vmatpush1.bf16.msra.mxu0 0
    %584 = vmatprep.subr.bf16.mxu0 0
    %585 = vmatpush1.bf16.msra.mxu0 0
    %586 = vmatprep.subr.bf16.mxu0 0
    %587 = vmatpush1.bf16.msra.mxu0 0
    %588 = vmatprep.subr.bf16.mxu0 0
    %589 = vmatpush1.bf16.msra.mxu0 0
    %590 = vmatprep.subr.bf16.mxu0 0
    %591 = vmatpush1.bf16.msra.mxu0 0
    %592 = vmatprep.subr.bf16.mxu0 0
    %593 = vmatpush1.bf16.msra.mxu0 0
    %594 = vmatprep.subr.bf16.mxu0 0
    %595 = vmatpush1.bf16.msra.mxu0 0
    %596 = vmatprep.subr.bf16.mxu0 0
    %597 = vmatpush1.bf16.msra.mxu0 0
    %598 = vmatprep.mubr.bf16.mxu0 0
    %599 = vmatmul.mubr.bf16.gmra.mrb[0].mxu0 %v565
    %v600 = vpop.f32.mrb[0].mxu0
    %v601 = vadd.f32 0.0, %v600
    %v602 = vpop.f32.mrb[0].mxu0
    %v603 = vpop.f32.mrb[0].mxu0
    %v604 = vpop.f32.mrb[0].mxu0
    %605 = vdwg.mxu0
    %v606 = vld [vmem:[%s190] sm:$0xff]
    %v607 = vadd.f32 %v606, %v601
    %v608 = vtanh.pop %v607
    %v609 = vpack.c.bf16 %v608, %v608
    %610 = vmatprep.subr.bf16.mxu0 0
    %611 = vmatpush1.bf16.msra.mxu0 %v506
    %612 = vmatprep.subr.bf16.mxu0 0
    %613 = vmatpush1.bf16.msra.mxu0 %v507
    %614 = vmatprep.subr.bf16.mxu0 0
    %615 = vmatpush1.bf16.msra.mxu0 %v508
    %616 = vmatprep.subr.bf16.mxu0 0
    %617 = vmatpush1.bf16.msra.mxu0 %v509
    %618 = vmatprep.subr.bf16.mxu0 0
    %619 = vmatpush1.bf16.msra.mxu0 %v510
    %620 = vmatprep.subr.bf16.mxu0 0
    %621 = vmatpush1.bf16.msra.mxu0 %v511
    %622 = vmatprep.subr.bf16.mxu0 0
    %623 = vmatpush1.bf16.msra.mxu0 %v512
    %624 = vmatprep.subr.bf16.mxu0 0
    %625 = vmatpush1.bf16.msra.mxu0 %v513
    %626 = vmatprep.subr.bf16.mxu0 0
    %627 = vmatpush1.bf16.msra.mxu0 0
    %628 = vmatprep.subr.bf16.mxu0 0
    %629 = vmatpush1.bf16.msra.mxu0 0
    %630 = vmatprep.subr.bf16.mxu0 0
    %631 = vmatpush1.bf16.msra.mxu0 0
    %632 = vmatprep.subr.bf16.mxu0 0
    %633 = vmatpush1.bf16.msra.mxu0 0
    %634 = vmatprep.subr.bf16.mxu0 0
    %635 = vmatpush1.bf16.msra.mxu0 0
    %636 = vmatprep.subr.bf16.mxu0 0
    %637 = vmatpush1.bf16.msra.mxu0 0
    %638 = vmatprep.subr.bf16.mxu0 0
    %639 = vmatpush1.bf16.msra.mxu0 0
    %640 = vmatprep.subr.bf16.mxu0 0
    %641 = vmatpush1.bf16.msra.mxu0 0
    %642 = vmatprep.mubr.bf16.mxu0 0
    %643 = vmatmul.mubr.bf16.gmra.mrb[0].mxu0 %v609
    %v644 = vpop.f32.mrb[0].mxu0
    %v645 = vadd.f32 0.0, %v644
    %v646 = vpop.f32.mrb[0].mxu0
    %v647 = vpop.f32.mrb[0].mxu0
    %v648 = vpop.f32.mrb[0].mxu0
    %649 = vdwg.mxu0
    %v650 = vld [vmem:[%s237] sm:$0xff]
    %v651 = vadd.f32 %v650, %v645
    %v652 = vtanh.pop %v651
    %v653 = vpack.c.bf16 %v652, %v652
    %654 = vmatprep.subr.bf16.mxu0 0
    %655 = vmatpush1.bf16.msra.mxu0 %v506
    %656 = vmatprep.subr.bf16.mxu0 0
    %657 = vmatpush1.bf16.msra.mxu0 %v507
    %658 = vmatprep.subr.bf16.mxu0 0
    %659 = vmatpush1.bf16.msra.mxu0 %v508
    %660 = vmatprep.subr.bf16.mxu0 0
    %661 = vmatpush1.bf16.msra.mxu0 %v509
    %662 = vmatprep.subr.bf16.mxu0 0
    %663 = vmatpush1.bf16.msra.mxu0 %v510
    %664 = vmatprep.subr.bf16.mxu0 0
    %665 = vmatpush1.bf16.msra.mxu0 %v511
    %666 = vmatprep.subr.bf16.mxu0 0
    %667 = vmatpush1.bf16.msra.mxu0 %v512
    %668 = vmatprep.subr.bf16.mxu0 0
    %669 = vmatpush1.bf16.msra.mxu0 %v513
    %670 = vmatprep.subr.bf16.mxu0 0
    %671 = vmatpush1.bf16.msra.mxu0 0
    %672 = vmatprep.subr.bf16.mxu0 0
    %673 = vmatpush1.bf16.msra.mxu0 0
    %674 = vmatprep.subr.bf16.mxu0 0
    %675 = vmatpush1.bf16.msra.mxu0 0
    %676 = vmatprep.subr.bf16.mxu0 0
    %677 = vmatpush1.bf16.msra.mxu0 0
    %678 = vmatprep.subr.bf16.mxu0 0
    %679 = vmatpush1.bf16.msra.mxu0 0
    %680 = vmatprep.subr.bf16.mxu0 0
    %681 = vmatpush1.bf16.msra.mxu0 0
    %682 = vmatprep.subr.bf16.mxu0 0
    %683 = vmatpush1.bf16.msra.mxu0 0
    %684 = vmatprep.subr.bf16.mxu0 0
    %685 = vmatpush1.bf16.msra.mxu0 0
    %686 = vmatprep.mubr.bf16.mxu0 0
    %687 = vmatmul.mubr.bf16.gmra.mrb[0].mxu0 %v653
    %v688 = vpop.f32.mrb[0].mxu0
    %v689 = vadd.f32 0.0, %v688
    %v690 = vpop.f32.mrb[0].mxu0
    %v691 = vpop.f32.mrb[0].mxu0
    %v692 = vpop.f32.mrb[0].mxu0
    %693 = vdwg.mxu0
    %v694 = vld [vmem:[%s284] sm:$0xff]
    %v695 = vadd.f32 %v694, %v689
    %v696 = vtanh.pop %v695
    %v697 = vpack.c.bf16 %v696, %v696
    %698 = vmatprep.subr.bf16.mxu0 0
    %699 = vmatpush1.bf16.msra.mxu0 %v506
    %700 = vmatprep.subr.bf16.mxu0 0
    %701 = vmatpush1.bf16.msra.mxu0 %v507
    %702 = vmatprep.subr.bf16.mxu0 0
    %703 = vmatpush1.bf16.msra.mxu0 %v508
    %704 = vmatprep.subr.bf16.mxu0 0
    %705 = vmatpush1.bf16.msra.mxu0 %v509
    %706 = vmatprep.subr.bf16.mxu0 0
    %707 = vmatpush1.bf16.msra.mxu0 %v510
    %708 = vmatprep.subr.bf16.mxu0 0
    %709 = vmatpush1.bf16.msra.mxu0 %v511
    %710 = vmatprep.subr.bf16.mxu0 0
    %711 = vmatpush1.bf16.msra.mxu0 %v512
    %712 = vmatprep.subr.bf16.mxu0 0
    %713 = vmatpush1.bf16.msra.mxu0 %v513
    %714 = vmatprep.subr.bf16.mxu0 0
    %715 = vmatpush1.bf16.msra.mxu0 0
    %716 = vmatprep.subr.bf16.mxu0 0
    %717 = vmatpush1.bf16.msra.mxu0 0
    %718 = vmatprep.subr.bf16.mxu0 0
    %719 = vmatpush1.bf16.msra.mxu0 0
    %720 = vmatprep.subr.bf16.mxu0 0
    %721 = vmatpush1.bf16.msra.mxu0 0
    %722 = vmatprep.subr.bf16.mxu0 0
    %723 = vmatpush1.bf16.msra.mxu0 0
    %724 = vmatprep.subr.bf16.mxu0 0
    %725 = vmatpush1.bf16.msra.mxu0 0
    %726 = vmatprep.subr.bf16.mxu0 0
    %727 = vmatpush1.bf16.msra.mxu0 0
    %728 = vmatprep.subr.bf16.mxu0 0
    %729 = vmatpush1.bf16.msra.mxu0 0
    %730 = vmatprep.mubr.bf16.mxu0 0
    %731 = vmatmul.mubr.bf16.gmra.mrb[0].mxu0 %v697
    %v732 = vpop.f32.mrb[0].mxu0
    %v733 = vadd.f32 0.0, %v732
    %v734 = vpop.f32.mrb[0].mxu0
    %v735 = vpop.f32.mrb[0].mxu0
    %v736 = vpop.f32.mrb[0].mxu0
    %737 = vdwg.mxu0
    %v738 = vld [vmem:[%s331] sm:$0xff]
    %v739 = vadd.f32 %v738, %v733
    %v740 = vtanh.pop %v739
    %v741 = vpack.c.bf16 %v740, %v740
    %742 = vmatprep.subr.bf16.mxu0 0
    %743 = vmatpush1.bf16.msra.mxu0 %v506
    %744 = vmatprep.subr.bf16.mxu0 0
    %745 = vmatpush1.bf16.msra.mxu0 %v507
    %746 = vmatprep.subr.bf16.mxu0 0
    %747 = vmatpush1.bf16.msra.mxu0 %v508
    %748 = vmatprep.subr.bf16.mxu0 0
    %749 = vmatpush1.bf16.msra.mxu0 %v509
    %750 = vmatprep.subr.bf16.mxu0 0
    %751 = vmatpush1.bf16.msra.mxu0 %v510
    %752 = vmatprep.subr.bf16.mxu0 0
    %753 = vmatpush1.bf16.msra.mxu0 %v511
    %754 = vmatprep.subr.bf16.mxu0 0
    %755 = vmatpush1.bf16.msra.mxu0 %v512
    %756 = vmatprep.subr.bf16.mxu0 0
    %757 = vmatpush1.bf16.msra.mxu0 %v513
    %758 = vmatprep.subr.bf16.mxu0 0
    %759 = vmatpush1.bf16.msra.mxu0 0
    %760 = vmatprep.subr.bf16.mxu0 0
    %761 = vmatpush1.bf16.msra.mxu0 0
    %762 = vmatprep.subr.bf16.mxu0 0
    %763 = vmatpush1.bf16.msra.mxu0 0
    %764 = vmatprep.subr.bf16.mxu0 0
    %765 = vmatpush1.bf16.msra.mxu0 0
    %766 = vmatprep.subr.bf16.mxu0 0
    %767 = vmatpush1.bf16.msra.mxu0 0
    %768 = vmatprep.subr.bf16.mxu0 0
    %769 = vmatpush1.bf16.msra.mxu0 0
    %770 = vmatprep.subr.bf16.mxu0 0
    %771 = vmatpush1.bf16.msra.mxu0 0
    %772 = vmatprep.subr.bf16.mxu0 0
    %773 = vmatpush1.bf16.msra.mxu0 0
    %774 = vmatprep.mubr.bf16.mxu0 0
    %775 = vmatmul.mubr.bf16.gmra.mrb[0].mxu0 %v741
    %v776 = vpop.f32.mrb[0].mxu0
    %v777 = vadd.f32 0.0, %v776
    %v778 = vpop.f32.mrb[0].mxu0
    %v779 = vpop.f32.mrb[0].mxu0
    %v780 = vpop.f32.mrb[0].mxu0
    %781 = vdwg.mxu0
    %v782 = vld [vmem:[%s378] sm:$0xff]
    %v783 = vadd.f32 %v782, %v777
    %v784 = vtanh.pop %v783
    %v785 = vpack.c.bf16 %v784, %v784
    %786 = vmatprep.subr.bf16.mxu0 0
    %787 = vmatpush1.bf16.msra.mxu0 %v506
    %788 = vmatprep.subr.bf16.mxu0 0
    %789 = vmatpush1.bf16.msra.mxu0 %v507
    %790 = vmatprep.subr.bf16.mxu0 0
    %791 = vmatpush1.bf16.msra.mxu0 %v508
    %792 = vmatprep.subr.bf16.mxu0 0
    %793 = vmatpush1.bf16.msra.mxu0 %v509
    %794 = vmatprep.subr.bf16.mxu0 0
    %795 = vmatpush1.bf16.msra.mxu0 %v510
    %796 = vmatprep.subr.bf16.mxu0 0
    %797 = vmatpush1.bf16.msra.mxu0 %v511
    %798 = vmatprep.subr.bf16.mxu0 0
    %799 = vmatpush1.bf16.msra.mxu0 %v512
    %800 = vmatprep.subr.bf16.mxu0 0
    %801 = vmatpush1.bf16.msra.mxu0 %v513
    %802 = vmatprep.subr.bf16.mxu0 0
    %803 = vmatpush1.bf16.msra.mxu0 0
    %804 = vmatprep.subr.bf16.mxu0 0
    %805 = vmatpush1.bf16.msra.mxu0 0
    %806 = vmatprep.subr.bf16.mxu0 0
    %807 = vmatpush1.bf16.msra.mxu0 0
    %808 = vmatprep.subr.bf16.mxu0 0
    %809 = vmatpush1.bf16.msra.mxu0 0
    %810 = vmatprep.subr.bf16.mxu0 0
    %811 = vmatpush1.bf16.msra.mxu0 0
    %812 = vmatprep.subr.bf16.mxu0 0
    %813 = vmatpush1.bf16.msra.mxu0 0
    %814 = vmatprep.subr.bf16.mxu0 0
    %815 = vmatpush1.bf16.msra.mxu0 0
    %816 = vmatprep.subr.bf16.mxu0 0
    %817 = vmatpush1.bf16.msra.mxu0 0
    %818 = vmatprep.mubr.bf16.mxu0 0
    %819 = vmatmul.mubr.bf16.gmra.mrb[0].mxu0 %v785
    %v820 = vpop.f32.mrb[0].mxu0
    %v821 = vadd.f32 0.0, %v820
    %v822 = vpop.f32.mrb[0].mxu0
    %v823 = vpop.f32.mrb[0].mxu0
    %v824 = vpop.f32.mrb[0].mxu0
    %825 = vdwg.mxu0
    %v826 = vld [vmem:[%s425] sm:$0xff]
    %v827 = vadd.f32 %v826, %v821
    %v828 = vtanh.pop %v827
    %v829 = vpack.c.bf16 %v828, %v828
    %830 = vmatprep.subr.bf16.mxu0 0
    %831 = vmatpush1.bf16.msra.mxu0 %v506
    %832 = vmatprep.subr.bf16.mxu0 0
    %833 = vmatpush1.bf16.msra.mxu0 %v507
    %834 = vmatprep.subr.bf16.mxu0 0
    %835 = vmatpush1.bf16.msra.mxu0 %v508
    %836 = vmatprep.subr.bf16.mxu0 0
    %837 = vmatpush1.bf16.msra.mxu0 %v509
    %838 = vmatprep.subr.bf16.mxu0 0
    %839 = vmatpush1.bf16.msra.mxu0 %v510
    %840 = vmatprep.subr.bf16.mxu0 0
    %841 = vmatpush1.bf16.msra.mxu0 %v511
    %842 = vmatprep.subr.bf16.mxu0 0
    %843 = vmatpush1.bf16.msra.mxu0 %v512
    %844 = vmatprep.subr.bf16.mxu0 0
    %845 = vmatpush1.bf16.msra.mxu0 %v513
    %846 = vmatprep.subr.bf16.mxu0 0
    %847 = vmatpush1.bf16.msra.mxu0 0
    %848 = vmatprep.subr.bf16.mxu0 0
    %849 = vmatpush1.bf16.msra.mxu0 0
    %850 = vmatprep.subr.bf16.mxu0 0
    %851 = vmatpush1.bf16.msra.mxu0 0
    %852 = vmatprep.subr.bf16.mxu0 0
    %853 = vmatpush1.bf16.msra.mxu0 0
    %854 = vmatprep.subr.bf16.mxu0 0
    %855 = vmatpush1.bf16.msra.mxu0 0
    %856 = vmatprep.subr.bf16.mxu0 0
    %857 = vmatpush1.bf16.msra.mxu0 0
    %858 = vmatprep.subr.bf16.mxu0 0
    %859 = vmatpush1.bf16.msra.mxu0 0
    %860 = vmatprep.subr.bf16.mxu0 0
    %861 = vmatpush1.bf16.msra.mxu0 0
    %862 = vmatprep.mubr.bf16.mxu0 0
    %863 = vmatmul.mubr.bf16.gmra.mrb[0].mxu0 %v829
    %v864 = vpop.f32.mrb[0].mxu0
    %v865 = vadd.f32 0.0, %v864
    %v866 = vpop.f32.mrb[0].mxu0
    %v867 = vpop.f32.mrb[0].mxu0
    %v868 = vpop.f32.mrb[0].mxu0
    %869 = vdwg.mxu0
    %v870 = vld [vmem:[%s472] sm:$0xff]
    %v871 = vadd.f32 %v870, %v865
    %v872 = vtanh.pop %v871
    %v873 = vpack.c.bf16 %v872, %v872
    %v874 = vld [vmem:[#allocation9] sm:$0xf]
    %v875 = vld [vmem:[#allocation9 + $0x4] sm:$0xf]
    %v876 = vld [vmem:[#allocation9 + $0x8] sm:$0xf]
    %v877 = vld [vmem:[#allocation9 + $0xc] sm:$0xf]
    %v878 = vld [vmem:[#allocation9 + $0x10] sm:$0xf]
    %v879 = vld [vmem:[#allocation9 + $0x14] sm:$0xf]
    %v880 = vld [vmem:[#allocation9 + $0x18] sm:$0xf]
    %v881 = vld [vmem:[#allocation9 + $0x1c] sm:$0xf]
    %v882 = vld [vmem:[#allocation9 + $0x20] sm:$0xf]
    %v883 = vld [vmem:[#allocation9 + $0x24] sm:$0xf]
    %v884 = vld [vmem:[#allocation9 + $0x28] sm:$0xf]
    %v885 = vld [vmem:[#allocation9 + $0x2c] sm:$0xf]
    %v886 = vld [vmem:[#allocation9 + $0x30] sm:$0xf]
    %v887 = vld [vmem:[#allocation9 + $0x34] sm:$0xf]
    %v888 = vld [vmem:[#allocation9 + $0x38] sm:$0xf]
    %v889 = vld [vmem:[#allocation9 + $0x3c] sm:$0xf]
    %v890 = vld [vmem:[%s4] sm:$0x1]
    %v892 = vlaneseq
    %v893 = vshrl.u32 %v892, 7
    %v894 = vsub.s32 0, %v893
    %v895 = vrot.slane %v890, %v894
    %v913 = vunpack.c.l.b16 %v874
    %v914 = vunpack.c.l.b16 %v875
    %v915 = vunpack.c.l.b16 %v876
    %v916 = vunpack.c.l.b16 %v877
    %v917 = vunpack.c.l.b16 %v878
    %v918 = vunpack.c.l.b16 %v879
    %v919 = vunpack.c.l.b16 %v880
    %v920 = vunpack.c.l.b16 %v881
    %v921 = vunpack.c.l.b16 %v882
    %v922 = vunpack.c.l.b16 %v883
    %v923 = vunpack.c.l.b16 %v884
    %v924 = vunpack.c.l.b16 %v885
    %v925 = vunpack.c.l.b16 %v886
    %v926 = vunpack.c.l.b16 %v887
    %v927 = vunpack.c.l.b16 %v888
    %v928 = vunpack.c.l.b16 %v889
    %v929 = vpack.c.b16 %v914, %v913
    %v930 = vpack.c.b16 %v916, %v915
    %v931 = vpack.c.b16 %v918, %v917
    %v932 = vpack.c.b16 %v920, %v919
    %v933 = vpack.c.b16 %v922, %v921
    %v934 = vpack.c.b16 %v924, %v923
    %v935 = vpack.c.b16 %v926, %v925
    %v936 = vpack.c.b16 %v928, %v927
    %945 = vmatprep.subr.bf16.mxu0 0
    %946 = vmatpush1.bf16.msra.mxu0 %v929
    %947 = vmatprep.subr.bf16.mxu0 0
    %948 = vmatpush1.bf16.msra.mxu0 %v930
    %949 = vmatprep.subr.bf16.mxu0 0
    %950 = vmatpush1.bf16.msra.mxu0 %v931
    %951 = vmatprep.subr.bf16.mxu0 0
    %952 = vmatpush1.bf16.msra.mxu0 %v932
    %953 = vmatprep.subr.bf16.mxu0 0
    %954 = vmatpush1.bf16.msra.mxu0 %v933
    %955 = vmatprep.subr.bf16.mxu0 0
    %956 = vmatpush1.bf16.msra.mxu0 %v934
    %957 = vmatprep.subr.bf16.mxu0 0
    %958 = vmatpush1.bf16.msra.mxu0 %v935
    %959 = vmatprep.subr.bf16.mxu0 0
    %960 = vmatpush1.bf16.msra.mxu0 %v936
    %961 = vmatprep.subr.bf16.mxu0 0
    %962 = vmatpush1.bf16.msra.mxu0 0
    %963 = vmatprep.subr.bf16.mxu0 0
    %964 = vmatpush1.bf16.msra.mxu0 0
    %965 = vmatprep.subr.bf16.mxu0 0
    %966 = vmatpush1.bf16.msra.mxu0 0
    %967 = vmatprep.subr.bf16.mxu0 0
    %968 = vmatpush1.bf16.msra.mxu0 0
    %969 = vmatprep.subr.bf16.mxu0 0
    %970 = vmatpush1.bf16.msra.mxu0 0
    %971 = vmatprep.subr.bf16.mxu0 0
    %972 = vmatpush1.bf16.msra.mxu0 0
    %973 = vmatprep.subr.bf16.mxu0 0
    %974 = vmatpush1.bf16.msra.mxu0 0
    %975 = vmatprep.subr.bf16.mxu0 0
    %976 = vmatpush1.bf16.msra.mxu0 0
    %977 = vmatprep.mubr.bf16.mxu0 0
    %978 = vmatmul.mubr.bf16.gmra.mrb[0].mxu0 %v873
    %v979 = vpop.f32.mrb[0].mxu0
    %v980 = vadd.f32 %v895, %v979
    %v981 = vpop.f32.mrb[0].mxu0
    %v982 = vpop.f32.mrb[0].mxu0
    %v983 = vpop.f32.mrb[0].mxu0
    %984 = vdwg.mxu0
    %985 = vst [vmem:[#allocation11] sm:$0xff] %v980
    %986 = vst [vmem:[#allocation12] sm:$0xff] %v872
    // Predicated region
    $region38: #{tpu_custom_call.1} parent=1 // pred_check
      _
    $region39: #{tpu_custom_call.1} parent=1 // pred_check_branch
      %988 = sbr.rel (0) target = $region41
    $region40: #{tpu_custom_call.1} parent=1 // pred_region
      %s990 = ssub.s32 128, 128
      %991 = vsyncadd [#allocation5], %s990
      %s993 = sshll.u32 [#allocation11], 4
      %s994 = int_to_ptr.vmem [resolvable:$true] %s993
      %996 = dma.vmem_to_hbm [thread:$0]  %s994, 128, %s5, [#allocation5]
    $region41: #{tpu_custom_call.1} parent=1 // pred_fallthru
      _
    // Predicated region
    $region42: #{tpu_custom_call.1} parent=1 // pred_check
      _
    $region43: #{tpu_custom_call.1} parent=1 // pred_check_branch
      %998 = sbr.rel (0) target = $region45
    $region44: #{tpu_custom_call.1} parent=1 // pred_region
      %s1000 = ssub.s32 128, 128
      %1001 = vsyncadd [#allocation13], %s1000
      %s1003 = sshll.u32 [#allocation12], 4
      %s1004 = int_to_ptr.vmem [resolvable:$true] %s1003
      %1006 = dma.vmem_to_hbm [thread:$0]  %s1004, 128, %s6, [#allocation13]
    $region45: #{tpu_custom_call.1} parent=1 // pred_fallthru
      _
    // Predicated region
    $region46: #{tpu_custom_call.1} parent=1 // pred_check
      _
    $region47: #{tpu_custom_call.1} parent=1 // pred_check_branch
      %1008 = sbr.rel (0) target = $region49
    $region48: #{tpu_custom_call.1} parent=1 // pred_region
      %1009 = dma.done [#allocation5], 128
    $region49: #{tpu_custom_call.1} parent=1 // pred_fallthru
      _
    // Predicated region
    $region50: #{tpu_custom_call.1} parent=1 // pred_check
      _
    $region51: #{tpu_custom_call.1} parent=1 // pred_check_branch
      %1011 = sbr.rel (0) target = $region53
    $region52: #{tpu_custom_call.1} parent=1 // pred_region
      %1012 = dma.done [#allocation13], 128
    $region53: #{tpu_custom_call.1} parent=1 // pred_fallthru
      _
    %1013 = vsyncpa [#allocation4], 1
    %1014 = vsyncpa [#allocation7], 1
    %1015 = vsyncpa [#allocation10], 1
    %1016 = vsyncpa [#allocation5], 1
    %1017 = vsyncpa [#allocation13], 1

</llo_original>
